<compile_context>
chip_gen: v7x
topology: tpu7x:2x2x1
jax: 0.10.0
libtpu: 0.0.40
codegen_flags: <defaults>
</compile_context>

<pallas_src>
import functools

import jax
import jax.numpy as jnp
from jax.experimental import pallas as pl
from jax.experimental.pallas import tpu as pltpu


def _round_up(n, m):
    return ((n + m - 1) // m) * m


def _aggregate_kernel(x_ref, h_ref, o_ref, *, restrict_update,
                      normalize_map_features, valid_hs, hs_pad):
    x = x_ref[...]
    h = h_ref[...]

    # _compute_forward (concrete stand-in): element-wise max aggregation.
    x1 = jnp.maximum(x, h)

    if restrict_update:
        # Single select instead of float-mask blend (fewer VALU ops / vregs).
        x1 = jnp.where(x != 0, x1, h)

    if normalize_map_features:
        y = x1 + jnp.asarray(1e-10, x1.dtype)
        if valid_hs != hs_pad:
            # Exclude padded lanes from the norm so it matches the unpadded
            # reference exactly (compile-time-constant mask).
            lane = jax.lax.broadcasted_iota(jnp.int32, y.shape, dimension=1)
            y = jnp.where(lane < valid_hs, y, jnp.zeros_like(y))
        sq = jnp.sum(y * y, axis=1, keepdims=True)
        # rsqrt(max(sq, 1e-24)) == 1 / clamp_min(sqrt(sq), 1e-12)  (EUP op).
        x1 = y * jax.lax.rsqrt(jnp.maximum(sq, jnp.asarray(1e-24, sq.dtype)))

    o_ref[...] = x1.astype(o_ref.dtype)


def _choose_block_bs(bs, hs_pad, dtype_bytes,
                     target_bytes_per_buffer=2 << 20, min_grid_steps=8):
    """Largest row-block that (a) targets ~2 MiB per input buffer and
    (b) keeps >= min_grid_steps grid steps when the batch allows (v7x 2-TC)."""
    rows_budget = max(8, (target_bytes_per_buffer // (hs_pad * dtype_bytes)) // 8 * 8)
    rows_for_grid = max(8, _round_up(pl.cdiv(bs, min_grid_steps), 8))
    block_bs = min(rows_budget, rows_for_grid, _round_up(bs, 8))
    return max(8, block_bs)


def aggregate_forward(x, hidden, *, restrict_update=False,
                      normalize_map_features=False, block_bs=None):
    """Pallas implementation of AggregateModule.forward.

    x, hidden: (bs, hidden_size) float arrays.
    """
    assert x.shape == hidden.shape and x.ndim == 2
    bs, hs = x.shape
    dtype_bytes = jnp.dtype(x.dtype).itemsize

    # Lane-dense hidden dim: pad to a multiple of 128 (full row per tile).
    hs_pad = max(128, _round_up(hs, 128))

    if block_bs is None:
        block_bs = _choose_block_bs(bs, hs_pad, dtype_bytes)
    block_bs = max(8, _round_up(block_bs, 8))

    # Pad batch to a multiple of block_bs (rows are independent; sliced off).
    bs_pad = _round_up(bs, block_bs)

    if (bs_pad, hs_pad) != (bs, hs):
        pad = ((0, bs_pad - bs), (0, hs_pad - hs))
        x_p = jnp.pad(x, pad)
        h_p = jnp.pad(hidden, pad)
    else:
        x_p, h_p = x, hidden

    # Resident VMEM: 2 pipeline buffers x (2 inputs + 1 output) x tile bytes.
    tile_bytes = block_bs * hs_pad * dtype_bytes
    vmem_limit = min(48 << 20, max(16 << 20, 6 * tile_bytes + (4 << 20)))

    kernel = functools.partial(
        _aggregate_kernel,
        restrict_update=restrict_update,
        normalize_map_features=normalize_map_features,
        valid_hs=hs,
        hs_pad=hs_pad,
    )

    out = pl.pallas_call(
        kernel,
        out_shape=jax.ShapeDtypeStruct((bs_pad, hs_pad), x.dtype),
        grid_spec=pltpu.PrefetchScalarGridSpec(
            num_scalar_prefetch=0,
            grid=(bs_pad // block_bs,),
            in_specs=[
                pl.BlockSpec((block_bs, hs_pad), lambda i: (i, 0)),
                pl.BlockSpec((block_bs, hs_pad), lambda i: (i, 0)),
            ],
            out_specs=pl.BlockSpec((block_bs, hs_pad), lambda i: (i, 0)),
        ),
        compiler_params=pltpu.CompilerParams(
            dimension_semantics=("parallel",),
            vmem_limit_bytes=vmem_limit,
        ),
    )(x_p, h_p)

    if (bs_pad, hs_pad) != (bs, hs):
        out = out[:bs, :hs]
    return out


def _reference_forward(x, hidden, *, restrict_update, normalize_map_features):
    """Pure-JAX reference mirroring the PyTorch semantics."""
    x1 = jnp.maximum(x, hidden)  # _compute_forward stand-in (same as kernel)
    if restrict_update:
        x_mask = (x != 0).astype(x1.dtype)
        x1 = x_mask * x1 + (1.0 - x_mask) * hidden
    if normalize_map_features:
        y = x1 + 1e-10
        norm = jnp.maximum(jnp.linalg.norm(y, axis=1, keepdims=True), 1e-12)
        x1 = y / norm
    return x1


if __name__ == "__main__":
    key = jax.random.PRNGKey(0)
    bs, hidden_size = 16, 32   # small shapes; exercises lane-padding path too

    kx, kh, kz = jax.random.split(key, 3)
    x = jax.random.normal(kx, (bs, hidden_size), dtype=jnp.float32)
    hidden = jax.random.normal(kh, (bs, hidden_size), dtype=jnp.float32)
    # Zero out ~30% of x so restrict_update's (x != 0) mask is exercised.
    drop = jax.random.bernoulli(kz, p=0.3, shape=(bs, hidden_size))
    x = jnp.where(drop, 0.0, x)

    out = aggregate_forward(x, hidden,
                            restrict_update=True,
                            normalize_map_features=True)
    out = jax.block_until_ready(out)

    ref = _reference_forward(x, hidden,
                             restrict_update=True,
                             normalize_map_features=True)

    assert out.shape == (bs, hidden_size)
    assert jnp.allclose(out, ref, atol=1e-5, rtol=1e-5), "mismatch vs reference"

    # Also exercise the no-flags path (pure aggregation).
    out2 = jax.block_until_ready(aggregate_forward(x, hidden))
    ref2 = _reference_forward(x, hidden, restrict_update=False,
                              normalize_map_features=False)
    assert jnp.allclose(out2, ref2, atol=1e-6, rtol=1e-6), "mismatch (no flags)"

    print("KERNEL_OK")
</pallas_src>

<mosaic_0001>
module attributes {stable_mosaic.version = 11 : i64} {
  func.func @_aggregate_kernel(%arg0: i32, %arg1: memref<8x128xf32, #tpu.memory_space<vmem>>, %arg2: memref<8x128xf32, #tpu.memory_space<vmem>>, %arg3: memref<8x128xf32, #tpu.memory_space<vmem>>) attributes {dimension_semantics = [#tpu.dimension_semantics<parallel>], iteration_bounds = array<i64: 2>, scalar_prefetch = 0 : i64, scratch_operands = 0 : i64, tpu.core_type = #tpu.core_type<tc>, window_params = [{transform_indices = @transform_0, window_bounds = array<i64: 8, 128>}, {transform_indices = @transform_1, window_bounds = array<i64: 8, 128>}, {transform_indices = @transform_2, window_bounds = array<i64: 8, 128>}]} {
    %c0 = arith.constant 0 : index
    %c0_0 = arith.constant 0 : index
    %0 = vector.load %arg1[%c0, %c0_0] : memref<8x128xf32, #tpu.memory_space<vmem>>, vector<8x128xf32>
    %c0_1 = arith.constant 0 : index
    %c0_2 = arith.constant 0 : index
    %1 = vector.load %arg2[%c0_1, %c0_2] : memref<8x128xf32, #tpu.memory_space<vmem>>, vector<8x128xf32>
    %2 = arith.maximumf %0, %1 : vector<8x128xf32>
    %cst = arith.constant 0.000000e+00 : f32
    %3 = vector.broadcast %cst : f32 to vector<8x128xf32>
    %4 = arith.cmpf one, %0, %3 : vector<8x128xf32>
    %5 = arith.select %4, %2, %1 : vector<8x128xi1>, vector<8x128xf32>
    %cst_3 = arith.constant 1.000000e-10 : f32
    %6 = vector.broadcast %cst_3 : f32 to vector<8x128xf32>
    %7 = arith.addf %5, %6 : vector<8x128xf32>
    %8 = tpu.iota {dimensions = array<i32: 1>} : vector<8x128xi32>
    %c32_i32 = arith.constant 32 : i32
    %9 = vector.broadcast %c32_i32 : i32 to vector<8x128xi32>
    %10 = arith.cmpi slt, %8, %9 : vector<8x128xi32>
    %cst_4 = arith.constant 0.000000e+00 : f32
    %11 = vector.broadcast %cst_4 : f32 to vector<8x128xf32>
    %12 = arith.select %10, %7, %11 : vector<8x128xi1>, vector<8x128xf32>
    %13 = arith.mulf %12, %12 : vector<8x128xf32>
    %cst_5 = arith.constant dense<0.000000e+00> : vector<8xf32>
    %14 = vector.multi_reduction <add>, %13, %cst_5 [1] : vector<8x128xf32> to vector<8xf32>
    %15 = vector.shape_cast %14 : vector<8xf32> to vector<8x1xf32>
    %cst_6 = arith.constant 1.000000e-24 : f32
    %16 = vector.broadcast %cst_6 : f32 to vector<8x1xf32>
    %17 = arith.maximumf %15, %16 : vector<8x1xf32>
    %18 = math.rsqrt %17 : vector<8x1xf32>
    %19 = vector.broadcast %18 : vector<8x1xf32> to vector<8x128xf32>
    %20 = arith.mulf %12, %19 : vector<8x128xf32>
    %c0_7 = arith.constant 0 : index
    %c0_8 = arith.constant 0 : index
    %21 = vector.load %arg3[%c0_7, %c0_8] : memref<8x128xf32, #tpu.memory_space<vmem>>, vector<8x128xf32>
    tpu.vector_store %arg3[%c0_7, %c0_8], %20 {strides = array<i32>} : memref<8x128xf32, #tpu.memory_space<vmem>>, vector<8x128xf32>,
    return
  }
  func.func @transform_0(%arg0: i32) -> (i32, i32) {
    %c0_i32 = arith.constant 0 : i32
    %c0_i32_0 = arith.constant 0 : i32
    return %arg0, %c0_i32 : i32, i32
  }
  func.func @transform_1(%arg0: i32) -> (i32, i32) {
    %c0_i32 = arith.constant 0 : i32
    %c0_i32_0 = arith.constant 0 : i32
    return %arg0, %c0_i32 : i32, i32
  }
  func.func @transform_2(%arg0: i32) -> (i32, i32) {
    %c0_i32 = arith.constant 0 : i32
    %c0_i32_0 = arith.constant 0 : i32
    return %arg0, %c0_i32 : i32, i32
  }
}

</mosaic_0001>

<llo_original>
// kernel: tpu_custom_call.1
$region0: #{tpu_custom_call.1}
  #allocation0 [shape = 'u32[]', space=smem, size = 0x4, offset = 0x4, fixed_abs, tag = 'smem constant byte address 0x4 - core index']
  #allocation1 [shape = 'u32[144,128]{1,0:T(1,128)}', space=vmem, size = 0x12000, scoped, tag = 'internal scratch']
  %s0 = inlined_call_operand.hbm [shape: f32[16,128], index: 0, kind: input, shape index: {}]
  %s1 = inlined_call_operand.hbm [shape: f32[16,128], index: 1, kind: input, shape index: {}]
  %s2 = inlined_call_operand.hbm [shape: f32[16,128], index: 2, kind: output, shape index: {}]
  %s3 = sld [smem:[#allocation0]]
  $region49: #{tpu_custom_call.1} parent=0
    _
  %s5 = ssub.s32 1, %s3
  %s6 = scalar_select 0, %s5, %s3
  $region1: #{tpu_custom_call.1} parent=0
    #allocation2 [shape = 'u8[8192]{0}', space=vmem, size = 0x2000, scoped, tag = 'input window, operand 0']
    #allocation3 [shape = 's32[2]{0}', space=sflag, size = 0x8, scoped, tag = 'scoped memory for tpu_custom_call.1']
    #allocation4 [shape = 's32[2]{0}', space=sflag, size = 0x8, scoped, tag = 'scoped memory for tpu_custom_call.1']
    #allocation5 [shape = 'u8[8192]{0}', space=vmem, size = 0x2000, scoped, tag = 'input window, operand 1']
    #allocation6 [shape = 's32[2]{0}', space=sflag, size = 0x8, scoped, tag = 'scoped memory for tpu_custom_call.1']
    #allocation7 [shape = 'u8[8192]{0}', space=vmem, size = 0x2000, scoped, tag = 'output window, operand 0']
    %7 = vsyncpa [#allocation3], 0
    %s8 = scalar_lea.sflag [#allocation3], 1
    %9 = vsyncpa %s8, 0
    %10 = vsyncpa [#allocation6], 0
    %s11 = scalar_lea.sflag [#allocation6], 1
    %12 = vsyncpa %s11, 0
    %13 = vsyncpa [#allocation4], 0
    %s14 = scalar_lea.sflag [#allocation4], 1
    %15 = vsyncpa %s14, 0
    loop: start=0, step=1, limit=4
    $region2: #{tpu_custom_call.1} parent=1 // loop_pre_header
      _
    $region3: #{tpu_custom_call.1} parent=1 // loop_header
      %s17 = sphi 0, %s21
      %p18 = scmp.ge.s32.totalorder %s17, 4
      %s27 = sphi 0, %s29
      %s30 = sphi 0, %s27
      %s31 = sphi 0, %s30
      %s47 = sphi 0, %s31
      %s53 = sphi 0, %s55
      %s56 = sphi 0, %s53
      %s57 = sphi 0, %s56
      %s73 = sphi 0, %s57
      %s79 = sphi 0, %s81
      %s82 = sphi 0, %s79
      %s83 = sphi 0, %s82
      %s99 = sphi 0, %s83
    $region4: #{tpu_custom_call.1} parent=1 // loop_header_branch
      %20 = sbr.rel (%p18) target = $region8
    $region5: #{tpu_custom_call.1} parent=1 // loop_body
      %s22 = ssub.s32 %s17, 1
      %s23 = ssub.s32 %s17, 2
      %s24 = sadd.s32 %s17, 1
      %s25 = ssub.s32 %s17, %s24
      %p26 = scmp.eq.s32.totalorder %s25, 0
      %s28 = sadd.s32 %s27, 1
      %s29 = scalar_select %p26, %s27, %s28
      %p32 = pneg %p26
      %p33 = scmp.eq.s32.totalorder %s17, 1
      %p34 = por %p32, %p33
      %p35 = scmp.ne.s32.totalorder %s27, %s30
      %p36 = scmp.eq.s32.totalorder %s17, 0
      %p37 = por %p35, %p36
      %p38 = scmp.ne.s32.totalorder %s27, %s30
      %p39 = scmp.eq.s32.totalorder %s22, 1
      %p40 = por %p38, %p39
      %p41 = scmp.ne.s32.totalorder %s30, %s31
      %p42 = scmp.eq.s32.totalorder %s22, 0
      %p43 = por %p41, %p42
      %p44 = scmp.ne.s32.totalorder %s30, %s31
      %p45 = scmp.eq.s32.totalorder %s23, 1
      %p46 = por %p44, %p45
      %p48 = scmp.ne.s32.totalorder %s31, %s47
      %p49 = scmp.eq.s32.totalorder %s23, 0
      %p50 = por %p48, %p49
      %s51 = ssub.s32 %s17, %s24
      %p52 = scmp.eq.s32.totalorder %s51, 0
      %s54 = sadd.s32 %s53, 1
      %s55 = scalar_select %p52, %s53, %s54
      %p58 = pneg %p52
      %p59 = scmp.eq.s32.totalorder %s17, 1
      %p60 = por %p58, %p59
      %p61 = scmp.ne.s32.totalorder %s53, %s56
      %p62 = scmp.eq.s32.totalorder %s17, 0
      %p63 = por %p61, %p62
      %p64 = scmp.ne.s32.totalorder %s53, %s56
      %p65 = scmp.eq.s32.totalorder %s22, 1
      %p66 = por %p64, %p65
      %p67 = scmp.ne.s32.totalorder %s56, %s57
      %p68 = scmp.eq.s32.totalorder %s22, 0
      %p69 = por %p67, %p68
      %p70 = scmp.ne.s32.totalorder %s56, %s57
      %p71 = scmp.eq.s32.totalorder %s23, 1
      %p72 = por %p70, %p71
      %p74 = scmp.ne.s32.totalorder %s57, %s73
      %p75 = scmp.eq.s32.totalorder %s23, 0
      %p76 = por %p74, %p75
      %s77 = ssub.s32 %s17, %s24
      %p78 = scmp.eq.s32.totalorder %s77, 0
      %s80 = sadd.s32 %s79, 1
      %s81 = scalar_select %p78, %s79, %s80
      %p84 = pneg %p78
      %p85 = scmp.eq.s32.totalorder %s17, 1
      %p86 = por %p84, %p85
      %p87 = scmp.ne.s32.totalorder %s79, %s82
      %p88 = scmp.eq.s32.totalorder %s17, 0
      %p89 = por %p87, %p88
      %p90 = scmp.ne.s32.totalorder %s79, %s82
      %p91 = scmp.eq.s32.totalorder %s22, 1
      %p92 = por %p90, %p91
      %p93 = scmp.ne.s32.totalorder %s82, %s83
      %p94 = scmp.eq.s32.totalorder %s22, 0
      %p95 = por %p93, %p94
      %p96 = scmp.ne.s32.totalorder %s82, %s83
      %p97 = scmp.eq.s32.totalorder %s23, 1
      %p98 = por %p96, %p97
      %p100 = scmp.ne.s32.totalorder %s83, %s99
      %p101 = scmp.eq.s32.totalorder %s23, 0
      %p102 = por %p100, %p101
      %p103 = scmp.le.s32.totalorder 1, %s17
      %p104 = scmp.lt.s32.totalorder %s17, 3
      %p105 = pnand %p103, %p104
      %p106 = pneg %p105
      // Predicated region
      $region9: #{tpu_custom_call.1} parent=5 // pred_check
        _
      $region10: #{tpu_custom_call.1} parent=5 // pred_check_branch
        %108 = sbr.rel (%p105) target = $region12
      $region11: #{tpu_custom_call.1} parent=5 // pred_region
        %s109 = ssub.s32 %s17, 1
      $region12: #{tpu_custom_call.1} parent=5 // pred_fallthru
        _
      %p110 = scmp.lt.s32.totalorder %s17, 2
      // Predicated region
      $region13: #{tpu_custom_call.1} parent=5 // pred_check
        %p111 = pneg %p110
      $region14: #{tpu_custom_call.1} parent=5 // pred_check_branch
        %113 = sbr.rel (%p111) target = $region16
      $region15: #{tpu_custom_call.1} parent=5 // pred_region
        // Predicated region
        $region17: #{tpu_custom_call.1} parent=15 // pred_check
          %p114 = pneg %p37
        $region18: #{tpu_custom_call.1} parent=15 // pred_check_branch
          %116 = sbr.rel (%p114) target = $region20
        $region19: #{tpu_custom_call.1} parent=15 // pred_region
          %s117 = sand.u32 %s27, 1
          %s118 = scalar_lea.sflag [#allocation3], %s117
          %s119 = sand.u32 %s27, 1
          %s120 = smul.addr %s119, 8
          %s121 = scalar_lea.vmem [#allocation2], %s120
          %s123 = ssub.s32 128, 128
          %124 = vsyncadd %s118, %s123
          %s125 = smul.addr %s17, 128
          %s126 = scalar_lea.hbm %s0, %s125
          %s128 = sshll.u32 %s121, 4
          %s129 = int_to_ptr.vmem [resolvable:$true] %s128
          %131 = dma.hbm_to_vmem [thread:$0]  %s126, 128, %s129, %s118
        $region20: #{tpu_custom_call.1} parent=15 // pred_fallthru
          _
        // Predicated region
        $region21: #{tpu_custom_call.1} parent=15 // pred_check
          %p132 = pneg %p63
        $region22: #{tpu_custom_call.1} parent=15 // pred_check_branch
          %134 = sbr.rel (%p132) target = $region24
        $region23: #{tpu_custom_call.1} parent=15 // pred_region
          %s135 = sand.u32 %s53, 1
          %s136 = scalar_lea.sflag [#allocation6], %s135
          %s137 = sand.u32 %s53, 1
          %s138 = smul.addr %s137, 8
          %s139 = scalar_lea.vmem [#allocation5], %s138
          %s141 = ssub.s32 128, 128
          %142 = vsyncadd %s136, %s141
          %s143 = smul.addr %s17, 128
          %s144 = scalar_lea.hbm %s1, %s143
          %s146 = sshll.u32 %s139, 4
          %s147 = int_to_ptr.vmem [resolvable:$true] %s146
          %149 = dma.hbm_to_vmem [thread:$0]  %s144, 128, %s147, %s136
        $region24: #{tpu_custom_call.1} parent=15 // pred_fallthru
          _
      $region16: #{tpu_custom_call.1} parent=5 // pred_fallthru
        _
      %p150 = scmp.le.s32.totalorder 1, %s17
      %p151 = scmp.lt.s32.totalorder %s17, 3
      %p152 = pnand %p150, %p151
      %p153 = pneg %p152
      // Predicated region
      $region25: #{tpu_custom_call.1} parent=5 // pred_check
        _
      $region26: #{tpu_custom_call.1} parent=5 // pred_check_branch
        %155 = sbr.rel (%p152) target = $region28
      $region27: #{tpu_custom_call.1} parent=5 // pred_region
        %s156 = ssub.s32 %s17, 1
        %s157 = sand.u32 %s30, 1
        %s158 = scalar_lea.sflag [#allocation3], %s157
        %s159 = sand.u32 %s30, 1
        %s160 = smul.addr %s159, 8
        %s161 = scalar_lea.vmem [#allocation2], %s160
        // Predicated region
        $region29: #{tpu_custom_call.1} parent=27 // pred_check
          %p162 = pneg %p43
        $region30: #{tpu_custom_call.1} parent=27 // pred_check_branch
          %164 = sbr.rel (%p162) target = $region32
        $region31: #{tpu_custom_call.1} parent=27 // pred_region
          %165 = dma.done %s158, 128
        $region32: #{tpu_custom_call.1} parent=27 // pred_fallthru
          _
        %s166 = sand.u32 %s56, 1
        %s167 = scalar_lea.sflag [#allocation6], %s166
        %s168 = sand.u32 %s56, 1
        %s169 = smul.addr %s168, 8
        %s170 = scalar_lea.vmem [#allocation5], %s169
        // Predicated region
        $region33: #{tpu_custom_call.1} parent=27 // pred_check
          %p171 = pneg %p69
        $region34: #{tpu_custom_call.1} parent=27 // pred_check_branch
          %173 = sbr.rel (%p171) target = $region36
        $region35: #{tpu_custom_call.1} parent=27 // pred_region
          %174 = dma.done %s167, 128
        $region36: #{tpu_custom_call.1} parent=27 // pred_fallthru
          _
        %s175 = sand.u32 %s30, 1
        %s176 = scalar_lea.sflag [#allocation3], %s175
        %s177 = sand.u32 %s30, 1
        %s178 = smul.addr %s177, 8
        %s179 = scalar_lea.vmem [#allocation2], %s178
        %p180 = pneg %p43
        %p181 = pneg %p40
        %s182 = sand.u32 %s56, 1
        %s183 = scalar_lea.sflag [#allocation6], %s182
        %s184 = sand.u32 %s56, 1
        %s185 = smul.addr %s184, 8
        %s186 = scalar_lea.vmem [#allocation5], %s185
        %p187 = pneg %p69
        %p188 = pneg %p66
        %p189 = pneg %p95
        %p190 = pneg %p92
        %s191 = sand.u32 %s82, 1
        %s192 = scalar_lea.sflag [#allocation4], %s191
        %s193 = sand.u32 %s82, 1
        %s194 = smul.addr %s193, 8
        %s195 = scalar_lea.vmem [#allocation7], %s194
        %v196 = vld [vmem:[%s161] sm:$0xff]
        %v197 = vld [vmem:[%s170] sm:$0xff]
        %v198 = vmax.f32 %v196, %v197
        %vm199 = vcmp.ne.f32.partialorder %v196, 0.0
        %v200 = vsel %vm199, %v198, %v197
        %v201 = vadd.f32 %v200, 1e-10
        %v202 = vlaneseq
        %v203 = vand.u32 %v202, 127
        %vm204 = vcmp.lt.s32.totalorder %v203, 32
        %v205 = vsel %vm204, %v201, 0.0
        %v206 = vmul.f32 %v205, %v205
        %207 = vadd.xlane.f32.xlu0 %v206
        %v208 = vpop.xlane.xlu0 %207
        %v209 = vmax.f32 %v208, 1e-24
        %v210 = vrsqrt.pop %v209
        %v211 = vmul.f32 %v205, %v210
        %212 = vst [vmem:[%s195] sm:$0xff] %v211
        %s213 = sand.u32 %s82, 1
        %s214 = scalar_lea.sflag [#allocation4], %s213
        %s215 = sand.u32 %s82, 1
        %s216 = smul.addr %s215, 8
        %s217 = scalar_lea.vmem [#allocation7], %s216
        // Predicated region
        $region37: #{tpu_custom_call.1} parent=27 // pred_check
          %p218 = pneg %p92
        $region38: #{tpu_custom_call.1} parent=27 // pred_check_branch
          %220 = sbr.rel (%p218) target = $region40
        $region39: #{tpu_custom_call.1} parent=27 // pred_region
          %s222 = ssub.s32 128, 128
          %223 = vsyncadd %s214, %s222
          %s224 = smul.addr %s22, 128
          %s225 = scalar_lea.hbm %s2, %s224
          %s227 = sshll.u32 %s217, 4
          %s228 = int_to_ptr.vmem [resolvable:$true] %s227
          %230 = dma.vmem_to_hbm [thread:$0]  %s228, 128, %s225, %s214
        $region40: #{tpu_custom_call.1} parent=27 // pred_fallthru
          _
      $region28: #{tpu_custom_call.1} parent=5 // pred_fallthru
        _
      %p231 = scmp.le.s32.totalorder 2, %s17
      // Predicated region
      $region41: #{tpu_custom_call.1} parent=5 // pred_check
        %p232 = pneg %p231
      $region42: #{tpu_custom_call.1} parent=5 // pred_check_branch
        %234 = sbr.rel (%p232) target = $region44
      $region43: #{tpu_custom_call.1} parent=5 // pred_region
        %s235 = ssub.s32 %s17, 2
        // Predicated region
        $region45: #{tpu_custom_call.1} parent=43 // pred_check
          %p236 = pneg %p98
        $region46: #{tpu_custom_call.1} parent=43 // pred_check_branch
          %238 = sbr.rel (%p236) target = $region48
        $region47: #{tpu_custom_call.1} parent=43 // pred_region
          %s239 = sand.u32 %s83, 1
          %s240 = scalar_lea.sflag [#allocation4], %s239
          %s241 = sand.u32 %s83, 1
          %s242 = smul.addr %s241, 8
          %s243 = scalar_lea.vmem [#allocation7], %s242
          %244 = dma.done %s240, 128
        $region48: #{tpu_custom_call.1} parent=43 // pred_fallthru
          _
      $region44: #{tpu_custom_call.1} parent=5 // pred_fallthru
        _
    $region6: #{tpu_custom_call.1} parent=1 // loop_footer
      %s21 = sadd.s32 1, %s17
    $region7: #{tpu_custom_call.1} parent=1 // loop_footer_branch
      %16 = sbr.rel target = $region3
    $region8: #{tpu_custom_call.1} parent=1 // loop_exit
      _
    %245 = vsyncpa [#allocation3], 1
    %s246 = scalar_lea.sflag [#allocation3], 1
    %247 = vsyncpa %s246, 1
    %248 = vsyncpa [#allocation6], 1
    %s249 = scalar_lea.sflag [#allocation6], 1
    %250 = vsyncpa %s249, 1
    %251 = vsyncpa [#allocation4], 1
    %s252 = scalar_lea.sflag [#allocation4], 1
    %253 = vsyncpa %s252, 1

</llo_original>
